<compile_context>
chip_gen: v7x
topology: tpu7x:2x2x1
jax: 0.10.0
libtpu: 0.0.40
codegen_flags: <defaults>
</compile_context>

<pallas_src>
import functools
import math

import jax
import jax.numpy as jnp
from jax import lax
from jax.experimental import pallas as pl
from jax.experimental.pallas import tpu as pltpu


def _round_up(v, m):
    return ((v + m - 1) // m) * m


def _vmem_limit_bytes(est_bytes):
    """Generation-aware VMEM request: estimate + headroom, clamped to device VMEM."""
    cap = 128 << 20
    try:
        cap = int(getattr(pltpu.get_tpu_info(), "vmem_capacity_bytes", cap))
    except Exception:
        cap = 64 << 20  # safe clamp (v7x per-TC VMEM) if the query is unavailable
    need = int(est_bytes) + (8 << 20)
    return int(min(max(need, 32 << 20), cap))


# ----------------------------------------------------------------------------
# Pallas kernel 1: BatchNorm partial statistics of h = x @ W + b.
# h is computed per block but never stored; only per-block [sum(h); sum(h^2)]
# partials are written (8, Cp) per grid step.  No row masking: padded x rows
# are exactly zero, so their contribution (b and b^2 per row) is subtracted in
# the JAX finalize.
# ----------------------------------------------------------------------------
def _bn_stats_kernel(x_ref, w_ref, b_ref, stats_ref):
    h = jnp.dot(x_ref[...], w_ref[...], preferred_element_type=jnp.float32)
    h = h + b_ref[...]
    cp = h.shape[1]
    s = jnp.sum(h, axis=0, keepdims=True)            # (1, cp)
    ssq = jnp.sum(h * h, axis=0, keepdims=True)      # (1, cp)
    slot = lax.broadcasted_iota(jnp.int32, (8, cp), 0)
    stats_ref[...] = jnp.where(slot == 0, s, jnp.where(slot == 1, ssq, 0.0))


def mlp_bn_params(x, w_t, b, gamma, beta, *, eps=1e-5, tm_max=2048):
    """Returns (W_eff [C_in, Cp], shift_eff [1, Cp]) with the training-mode BN
    affine folded into the Linear weights/bias."""
    n, c_in = x.shape
    c_out = w_t.shape[1]
    cp = _round_up(c_out, 128)                        # lane-dense channel dim
    tm = min(tm_max, _round_up(n, 8))
    n_pad = _round_up(n, tm)
    grid_n = n_pad // tm

    x_p = jnp.zeros((n_pad, c_in), jnp.float32).at[:n].set(x)
    w_p = jnp.zeros((c_in, cp), jnp.float32).at[:, :c_out].set(w_t)
    b_p = jnp.zeros((1, cp), jnp.float32).at[0, :c_out].set(b)

    est = 2 * 4 * (tm * 128 + 3 * 8 * cp)             # double-buffered blocks (padded)
    partials = pl.pallas_call(
        _bn_stats_kernel,
        grid=(grid_n,),
        in_specs=[
            pl.BlockSpec((tm, c_in), lambda i: (i, 0)),
            pl.BlockSpec((c_in, cp), lambda i: (0, 0)),
            pl.BlockSpec((1, cp), lambda i: (0, 0)),
        ],
        out_specs=pl.BlockSpec((8, cp), lambda i: (i, 0)),
        out_shape=jax.ShapeDtypeStruct((grid_n * 8, cp), jnp.float32),
        compiler_params=pltpu.CompilerParams(
            dimension_semantics=("parallel",),
            vmem_limit_bytes=_vmem_limit_bytes(est),
        ),
    )(x_p, w_p, b_p)

    # Finalize (tiny, plain JAX): remove padded-row contributions, then derive
    # the BN affine and fold it into the Linear weights / bias.
    s_tot = partials[0::8].sum(axis=0)                # (cp,)
    ssq_tot = partials[1::8].sum(axis=0)              # (cp,)
    n_extra = n_pad - n                               # padded rows contributed b, b^2 each
    s_tot = s_tot - n_extra * b_p[0]
    ssq_tot = ssq_tot - n_extra * b_p[0] ** 2
    mean = s_tot / n
    # TODO(synk): E[h^2]-E[h]^2 in f32 can cancel for |mean| >> std; a Welford /
    # two-pass formulation would be more robust.
    var = jnp.maximum(ssq_tot / n - mean * mean, 0.0)

    gamma_p = jnp.zeros((cp,), jnp.float32).at[:c_out].set(gamma)
    beta_p = jnp.zeros((cp,), jnp.float32).at[:c_out].set(beta)
    scale = gamma_p * lax.rsqrt(var + eps)
    shift = beta_p - mean * scale
    w_eff = w_p * scale[None, :]                      # (c_in, cp)
    shift_eff = (scale * b_p[0] + shift).reshape(1, cp)
    return w_eff, shift_eff


# ----------------------------------------------------------------------------
# Pallas kernel 2: fused gather + Linear + BN-affine + ReLU + max over k.
#   out[m, :] = relu( max_{j<k} ( x[nbr[m, j], :] @ W_eff ) + shift_eff )
# The x table stays in HBM (pl.ANY) and is copied ONCE into a persistent VMEM
# scratch at grid step 0 (single buffer).  8 clusters are processed per inner
# step -> dense (8, Cp) maxima / stores; the per-neighbour Linear is one small
# MXU matmul (8, C_in) @ (C_in, Cp).
# ----------------------------------------------------------------------------
def _gather_mlp_max_kernel(nbr_ref, x_hbm, w_ref, shift_ref, o_ref,
                           x_vmem, row_buf, copy_sem, *, tm, k):
    i = pl.program_id(0)

    # Single-buffered feature table: the grid axis is "arbitrary" (sequential),
    # so step 0 runs first and the scratch persists across all later steps.
    @pl.when(i == 0)
    def _():
        cp_ = pltpu.make_async_copy(x_hbm, x_vmem, copy_sem.at[0])
        cp_.start()
        cp_.wait()

    w = w_ref[...]            # (c_in, cp)
    shift = shift_ref[...]    # (1, cp)

    def group_body(g, carry):
        base = (i * tm + g * 8) * k
        acc = None
        # Static unroll over neighbours and the 8 clusters of this group so the
        # LLO scheduler can interleave gather loads with MXU pushes / VPU maxes.
        for j in range(k):
            for r in range(8):
                idx = nbr_ref[base + r * k + j]
                row_buf[pl.ds(r, 1), :] = x_vmem[pl.ds(idx, 1), :]
            hj = jnp.dot(row_buf[...], w, preferred_element_type=jnp.float32)
            acc = hj if acc is None else jnp.maximum(acc, hj)
        out8 = jnp.maximum(acc + shift, 0.0)          # BN shift + ReLU, once per tile
        o_ref[pl.ds(pl.multiple_of(g * 8, 8), 8), :] = out8
        return carry

    lax.fori_loop(0, tm // 8, group_body, 0)


def gather_mlp_max(x, w_eff, shift_eff, nbr_idx, *, tm_max=128):
    n, c_in = x.shape
    cp = w_eff.shape[1]
    m, k = nbr_idx.shape
    tm = min(tm_max, _round_up(m, 8))
    m_pad = _round_up(m, tm)
    grid_m = m_pad // tm
    n_rows = _round_up(n, 8)

    x_p = jnp.zeros((n_rows, c_in), jnp.float32).at[:n].set(x)
    # Flattened 1-D int32 neighbour indices via scalar prefetch (compact SMEM).
    # TODO(synk): for very large M*k, block these per tile as a regular SMEM
    # input instead of prefetching the whole array.
    nbr_flat = jnp.zeros((m_pad * k,), jnp.int32).at[: m * k].set(
        nbr_idx.astype(jnp.int32).reshape(-1)
    )

    # VMEM estimate: single-buffered table (lane-tiled to 128) + small blocks.
    est = 4 * n_rows * max(c_in, 128) + 2 * 4 * (2 * 8 * cp + tm * cp) + (8 * 128 * 4)
    # TODO(synk): for point clouds too large for a resident table even in bf16,
    # page the touched x rows from HBM per tile with manual row DMAs instead.
    kernel = functools.partial(_gather_mlp_max_kernel, tm=tm, k=k)
    grid_spec = pltpu.PrefetchScalarGridSpec(
        num_scalar_prefetch=1,
        grid=(grid_m,),
        in_specs=[
            pl.BlockSpec(memory_space=pl.ANY),                 # x table stays in HBM
            pl.BlockSpec((c_in, cp), lambda i, nbr: (0, 0)),   # W_eff
            pl.BlockSpec((1, cp), lambda i, nbr: (0, 0)),      # shift_eff
        ],
        out_specs=pl.BlockSpec((tm, cp), lambda i, nbr: (i, 0)),
        scratch_shapes=[
            pltpu.VMEM((n_rows, c_in), jnp.float32),   # persistent single-copy table
            pltpu.VMEM((8, c_in), jnp.float32),        # gathered 8-row LHS tile
            pltpu.SemaphoreType.DMA((1,)),
        ],
    )
    return pl.pallas_call(
        kernel,
        grid_spec=grid_spec,
        out_shape=jax.ShapeDtypeStruct((m_pad, cp), jnp.float32),
        compiler_params=pltpu.CompilerParams(
            # "arbitrary" keeps the grid sequential so the step-0 table copy is
            # visible to every later step (and avoids table replication).
            # TODO(synk): on v7x megacore, shard grid_m across cores with a
            # per-core table copy for 2x throughput.
            dimension_semantics=("arbitrary",),
            vmem_limit_bytes=_vmem_limit_bytes(est),
        ),
    )(nbr_flat, x_p, w_eff, shift_eff)


# ----------------------------------------------------------------------------
# Glue: farthest point sampling (vmapped over graphs) and kNN index selection.
# ----------------------------------------------------------------------------
def fps_per_graph(pos_g, *, m):
    # TODO(synk): torch_geometric fps uses random_start=True; here the start is
    # deterministically the first point of each graph.
    n = pos_g.shape[0]
    sel0 = jnp.zeros((m,), jnp.int32)
    d0 = jnp.full((n,), jnp.inf, jnp.float32)

    def body(i, state):
        sel, d = state
        last = pos_g[sel[i - 1]]
        dist = jnp.sum((pos_g - last) ** 2, axis=-1)
        d = jnp.minimum(d, dist)
        sel = sel.at[i].set(jnp.argmax(d).astype(jnp.int32))
        return sel, d

    sel, _ = lax.fori_loop(1, m, body, (sel0, d0))
    return sel


def knn_indices(pos, pos_y, batch, batch_y, k):
    # TODO(synk): tile this O(M*N) distance matrix for large point clouds;
    # assumes every graph has at least k points (as in PyG usage here).
    d = jnp.sum((pos_y[:, None, :] - pos[None, :, :]) ** 2, axis=-1)
    cross = batch_y[:, None] != batch[None, :]
    d = jnp.where(cross, jnp.inf, d)
    _, idx = lax.top_k(-d, k)  # k smallest distances within the same graph
    return idx.astype(jnp.int32)


# ----------------------------------------------------------------------------
# Full TransitionDown forward
# ----------------------------------------------------------------------------
def transition_down(x, pos, batch, params, *, ratio, k, n_graphs, n_per):
    w_t, b, gamma, beta = params
    c_out = w_t.shape[1]

    # fps(pos, ratio, batch)  -- vmapped over graphs.
    m_per = int(math.ceil(ratio * n_per))
    sel = jax.vmap(functools.partial(fps_per_graph, m=m_per))(
        pos.reshape(n_graphs, n_per, 3)
    )
    offsets = (jnp.arange(n_graphs, dtype=jnp.int32) * n_per)[:, None]
    id_clusters = (sel + offsets).reshape(-1)

    sub_batch = batch[id_clusters]
    sub_pos = pos[id_clusters]

    # knn(pos, pos[id_clusters], k, batch_x=batch, batch_y=sub_batch)
    nbr_idx = knn_indices(pos, sub_pos, batch, sub_batch, k)

    # MLP (Linear + BN + ReLU) fused with the scatter-max gather; BN statistics
    # come from kernel 1, the Linear is recomputed on gathered rows in kernel 2.
    w_eff, shift_eff = mlp_bn_params(x, w_t, b, gamma, beta)
    out_pad = gather_mlp_max(x, w_eff, shift_eff, nbr_idx)
    out = out_pad[: nbr_idx.shape[0], :c_out]

    return out, sub_pos, sub_batch


# Pure-JAX reference (same sampled clusters / neighbours) for a sanity check.
def _reference_forward(x, nbr_idx, w_t, b, gamma, beta, eps=1e-5):
    h = x @ w_t + b
    mean = h.mean(axis=0)
    var = ((h - mean) ** 2).mean(axis=0)
    y = jnp.maximum(gamma * (h - mean) * lax.rsqrt(var + eps) + beta, 0.0)
    return jnp.max(y[nbr_idx], axis=1)


if __name__ == "__main__":
    in_channels, out_channels = 4, 32
    ratio, k = 0.25, 4
    n_graphs, n_per = 2, 16
    N = n_graphs * n_per

    key = jax.random.PRNGKey(0)
    kx, kp, kw, kb = jax.random.split(key, 4)

    x = jax.random.normal(kx, (N, in_channels), jnp.float32)
    pos = jax.random.normal(kp, (N, 3), jnp.float32)
    batch = jnp.repeat(jnp.arange(n_graphs, dtype=jnp.int32), n_per)

    # Deterministic synthetic parameters (torch Linear: weight [C_out, C_in]).
    W = jax.random.normal(kw, (out_channels, in_channels), jnp.float32) / math.sqrt(in_channels)
    b = jax.random.normal(kb, (out_channels,), jnp.float32) * 0.01
    gamma = jnp.ones((out_channels,), jnp.float32)
    beta = jnp.zeros((out_channels,), jnp.float32)
    params = (W.T, b, gamma, beta)  # weight pre-transposed: [C_in, C_out]

    out, sub_pos, sub_batch = transition_down(
        x, pos, batch, params, ratio=ratio, k=k, n_graphs=n_graphs, n_per=n_per
    )
    jax.block_until_ready((out, sub_pos, sub_batch))

    m_total = n_graphs * int(math.ceil(ratio * n_per))
    assert out.shape == (m_total, out_channels)
    assert sub_pos.shape == (m_total, 3)
    assert sub_batch.shape == (m_total,)

    # Numerical sanity check against a pure-JAX reference using the same
    # cluster / neighbour indices.
    nbr_idx = knn_indices(pos, sub_pos, batch, sub_batch, k)
    ref = _reference_forward(x, nbr_idx, W.T, b, gamma, beta)
    assert jnp.max(jnp.abs(out - ref)) < 5e-3

    print("KERNEL_OK")
</pallas_src>

<mosaic_0001>
module attributes {stable_mosaic.version = 11 : i64} {
  func.func @_bn_stats_kernel(%arg0: i32, %arg1: memref<32x4xf32, #tpu.memory_space<vmem>>, %arg2: memref<4x128xf32, #tpu.memory_space<vmem>>, %arg3: memref<1x128xf32, #tpu.memory_space<vmem>>, %arg4: memref<8x128xf32, #tpu.memory_space<vmem>>) attributes {dimension_semantics = [#tpu.dimension_semantics<parallel>], iteration_bounds = array<i64: 1>, scalar_prefetch = 0 : i64, scratch_operands = 0 : i64, tpu.core_type = #tpu.core_type<tc>, window_params = [{transform_indices = @transform_0, window_bounds = array<i64: 32, 4>}, {pipeline_mode = #tpu.pipeline_mode<synchronous>, transform_indices = @transform_1, window_bounds = array<i64: 4, 128>}, {pipeline_mode = #tpu.pipeline_mode<synchronous>, transform_indices = @transform_2, window_bounds = array<i64: 1, 128>}, {transform_indices = @transform_3, window_bounds = array<i64: 8, 128>}]} {
    %c0 = arith.constant 0 : index
    %c0_0 = arith.constant 0 : index
    %0 = vector.load %arg1[%c0, %c0_0] : memref<32x4xf32, #tpu.memory_space<vmem>>, vector<32x4xf32>
    %c0_1 = arith.constant 0 : index
    %c0_2 = arith.constant 0 : index
    %1 = vector.load %arg2[%c0_1, %c0_2] : memref<4x128xf32, #tpu.memory_space<vmem>>, vector<4x128xf32>
    %cst = arith.constant dense<0.000000e+00> : vector<32x128xf32>
    %2 = tpu.matmul %0, %1, %cst {dimension_numbers = #tpu.dot_dimension_numbers<[1], [0], [0], [1], [0, 0, 1, 1], [], []>} : vector<32x4xf32>, vector<4x128xf32>, vector<32x128xf32> -> vector<32x128xf32>
    %c0_3 = arith.constant 0 : index
    %c0_4 = arith.constant 0 : index
    %3 = vector.load %arg3[%c0_3, %c0_4] : memref<1x128xf32, #tpu.memory_space<vmem>>, vector<1x128xf32>
    %4 = vector.broadcast %3 : vector<1x128xf32> to vector<32x128xf32>
    %5 = arith.addf %2, %4 : vector<32x128xf32>
    %cst_5 = arith.constant dense<0.000000e+00> : vector<128xf32>
    %6 = vector.multi_reduction <add>, %5, %cst_5 [0] : vector<32x128xf32> to vector<128xf32>
    %7 = vector.shape_cast %6 : vector<128xf32> to vector<1x128xf32>
    %8 = arith.mulf %5, %5 : vector<32x128xf32>
    %cst_6 = arith.constant dense<0.000000e+00> : vector<128xf32>
    %9 = vector.multi_reduction <add>, %8, %cst_6 [0] : vector<32x128xf32> to vector<128xf32>
    %10 = vector.shape_cast %9 : vector<128xf32> to vector<1x128xf32>
    %11 = tpu.iota {dimensions = array<i32: 0>} : vector<8x128xi32>
    %c0_i32 = arith.constant 0 : i32
    %12 = vector.broadcast %c0_i32 : i32 to vector<8x128xi32>
    %13 = arith.cmpi eq, %11, %12 : vector<8x128xi32>
    %c1_i32 = arith.constant 1 : i32
    %14 = vector.broadcast %c1_i32 : i32 to vector<8x128xi32>
    %15 = arith.cmpi eq, %11, %14 : vector<8x128xi32>
    %cst_7 = arith.constant 0.000000e+00 : f32
    %16 = vector.shape_cast %10 : vector<1x128xf32> to vector<1x128xf32>
    %17 = vector.broadcast %16 : vector<1x128xf32> to vector<8x128xf32>
    %18 = vector.broadcast %cst_7 : f32 to vector<8x128xf32>
    %19 = arith.select %15, %17, %18 : vector<8x128xi1>, vector<8x128xf32>
    %20 = vector.shape_cast %7 : vector<1x128xf32> to vector<1x128xf32>
    %21 = vector.broadcast %20 : vector<1x128xf32> to vector<8x128xf32>
    %22 = arith.select %13, %21, %19 : vector<8x128xi1>, vector<8x128xf32>
    %c0_8 = arith.constant 0 : index
    %c0_9 = arith.constant 0 : index
    %23 = vector.load %arg4[%c0_8, %c0_9] : memref<8x128xf32, #tpu.memory_space<vmem>>, vector<8x128xf32>
    tpu.vector_store %arg4[%c0_8, %c0_9], %22 {strides = array<i32>} : memref<8x128xf32, #tpu.memory_space<vmem>>, vector<8x128xf32>,
    return
  }
  func.func @transform_0(%arg0: i32) -> (i32, i32) {
    %c0_i32 = arith.constant 0 : i32
    %c0_i32_0 = arith.constant 0 : i32
    return %arg0, %c0_i32 : i32, i32
  }
  func.func @transform_1(%arg0: i32) -> (i32, i32) {
    %c0_i32 = arith.constant 0 : i32
    %c0_i32_0 = arith.constant 0 : i32
    %c0_i32_1 = arith.constant 0 : i32
    return %c0_i32, %c0_i32_0 : i32, i32
  }
  func.func @transform_2(%arg0: i32) -> (i32, i32) {
    %c0_i32 = arith.constant 0 : i32
    %c0_i32_0 = arith.constant 0 : i32
    %c0_i32_1 = arith.constant 0 : i32
    return %c0_i32, %c0_i32_0 : i32, i32
  }
  func.func @transform_3(%arg0: i32) -> (i32, i32) {
    %c0_i32 = arith.constant 0 : i32
    %c0_i32_0 = arith.constant 0 : i32
    return %arg0, %c0_i32 : i32, i32
  }
}

</mosaic_0001>

<llo_original>
// kernel: tpu_custom_call.1
$region0: #{tpu_custom_call.1}
  #allocation0 [shape = 'u32[]', space=smem, size = 0x4, offset = 0x4, fixed_abs, tag = 'smem constant byte address 0x4 - core index']
  #allocation1 [shape = 'u32[144,128]{1,0:T(1,128)}', space=vmem, size = 0x12000, scoped, tag = 'internal scratch']
  %s0 = inlined_call_operand.vmem [shape: f32[32,4], index: 0, kind: input, shape index: {}]
  %s1 = inlined_call_operand.vmem [shape: f32[4,128], index: 1, kind: input, shape index: {}]
  %s2 = inlined_call_operand.vmem [shape: f32[1,128], index: 2, kind: input, shape index: {}]
  %s3 = inlined_call_operand.hbm [shape: f32[8,128], index: 3, kind: output, shape index: {}]
  %s4 = sld [smem:[#allocation0]]
  $region22: #{tpu_custom_call.1} parent=0
    _
  %s6 = ssub.s32 1, %s4
  %s7 = scalar_select 0, %s6, %s4
  $region1: #{tpu_custom_call.1} parent=0
    #allocation2 [shape = 'u8[4096]{0}', space=vmem, size = 0x1000, scoped, tag = 'output window, operand 0, single buffered']
    #allocation3 [shape = 's32[1]{0}', space=sflag, size = 0x4, scoped, tag = 'scoped memory for tpu_custom_call.1']
    %8 = vsyncpa [#allocation3], 0
    // Predicated region
    $region2: #{tpu_custom_call.1} parent=1 // pred_check
      _
    $region3: #{tpu_custom_call.1} parent=1 // pred_check_branch
      %10 = sbr.rel (0) target = $region5
    $region4: #{tpu_custom_call.1} parent=1 // pred_region
      _
    $region5: #{tpu_custom_call.1} parent=1 // pred_fallthru
      _
    // Predicated region
    $region6: #{tpu_custom_call.1} parent=1 // pred_check
      _
    $region7: #{tpu_custom_call.1} parent=1 // pred_check_branch
      %12 = sbr.rel (0) target = $region9
    $region8: #{tpu_custom_call.1} parent=1 // pred_region
      _
    $region9: #{tpu_custom_call.1} parent=1 // pred_fallthru
      _
    // Predicated region
    $region10: #{tpu_custom_call.1} parent=1 // pred_check
      _
    $region11: #{tpu_custom_call.1} parent=1 // pred_check_branch
      %14 = sbr.rel (0) target = $region13
    $region12: #{tpu_custom_call.1} parent=1 // pred_region
      _
    $region13: #{tpu_custom_call.1} parent=1 // pred_fallthru
      _
    %v15 = vld [vmem:[%s0] sm:$0xff]
    %v16 = vld [vmem:[%s0 + $0x8] sm:$0xff]
    %v17 = vld [vmem:[%s0 + $0x10] sm:$0xff]
    %v18 = vld [vmem:[%s0 + $0x18] sm:$0xff]
    %v19 = vld [vmem:[%s1] sm:$0xf]
    %v20 = vld [vmem:[%s2] sm:$0x1]
    %v22 = vlaneseq
    %v23 = vshrl.u32 %v22, 7
    %v24 = vsub.s32 0, %v23
    %v25 = vrot.slane %v20, %v24
    %vm27 = vcmask 31744
    %v29 = vsel %vm27, %v15, 0
    %v32 = vsel %vm27, %v16, 0
    %v35 = vsel %vm27, %v17, 0
    %v38 = vsel %vm27, %v18, 0
    %vm40 = vcmask 1043456
    %v42 = vsel %vm40, %v19, 0
    %44 = vmatprep.subr.mxu0 0.0
    %45 = vmatpush1.msra.mxu0 %v42
    %46 = vmatprep.subr.mxu0 0.0
    %47 = vmatpush1.msra.mxu0 0.0
    %48 = vmatprep.subr.mxu0 0.0
    %49 = vmatpush1.msra.mxu0 0.0
    %50 = vmatprep.subr.mxu0 0.0
    %51 = vmatpush1.msra.mxu0 0.0
    %52 = vmatprep.subr.mxu0 0.0
    %53 = vmatpush1.msra.mxu0 0.0
    %54 = vmatprep.subr.mxu0 0.0
    %55 = vmatpush1.msra.mxu0 0.0
    %56 = vmatprep.subr.mxu0 0.0
    %57 = vmatpush1.msra.mxu0 0.0
    %58 = vmatprep.subr.mxu0 0.0
    %59 = vmatpush1.msra.mxu0 0.0
    %60 = vmatprep.subr.mxu0 0.0
    %61 = vmatpush1.msra.mxu0 0.0
    %62 = vmatprep.subr.mxu0 0.0
    %63 = vmatpush1.msra.mxu0 0.0
    %64 = vmatprep.subr.mxu0 0.0
    %65 = vmatpush1.msra.mxu0 0.0
    %66 = vmatprep.subr.mxu0 0.0
    %67 = vmatpush1.msra.mxu0 0.0
    %68 = vmatprep.subr.mxu0 0.0
    %69 = vmatpush1.msra.mxu0 0.0
    %70 = vmatprep.subr.mxu0 0.0
    %71 = vmatpush1.msra.mxu0 0.0
    %72 = vmatprep.subr.mxu0 0.0
    %73 = vmatpush1.msra.mxu0 0.0
    %74 = vmatprep.subr.mxu0 0.0
    %75 = vmatpush1.msra.mxu0 0.0
    %76 = vmatprep.subr.mxu0 0.0
    %77 = vmatpush1.msra.mxu0 0.0
    %78 = vmatprep.subr.mxu0 0.0
    %79 = vmatpush1.msra.mxu0 0.0
    %80 = vmatprep.subr.mxu0 0.0
    %81 = vmatpush1.msra.mxu0 0.0
    %82 = vmatprep.subr.mxu0 0.0
    %83 = vmatpush1.msra.mxu0 0.0
    %84 = vmatprep.subr.mxu0 0.0
    %85 = vmatpush1.msra.mxu0 0.0
    %86 = vmatprep.subr.mxu0 0.0
    %87 = vmatpush1.msra.mxu0 0.0
    %88 = vmatprep.subr.mxu0 0.0
    %89 = vmatpush1.msra.mxu0 0.0
    %90 = vmatprep.subr.mxu0 0.0
    %91 = vmatpush1.msra.mxu0 0.0
    %92 = vmatprep.subr.mxu0 0.0
    %93 = vmatpush1.msra.mxu0 0.0
    %94 = vmatprep.subr.mxu0 0.0
    %95 = vmatpush1.msra.mxu0 0.0
    %96 = vmatprep.subr.mxu0 0.0
    %97 = vmatpush1.msra.mxu0 0.0
    %98 = vmatprep.subr.mxu0 0.0
    %99 = vmatpush1.msra.mxu0 0.0
    %100 = vmatprep.subr.mxu0 0.0
    %101 = vmatpush1.msra.mxu0 0.0
    %102 = vmatprep.subr.mxu0 0.0
    %103 = vmatpush1.msra.mxu0 0.0
    %104 = vmatprep.subr.mxu0 0.0
    %105 = vmatpush1.msra.mxu0 0.0
    %106 = vmatprep.subr.mxu0 0.0
    %107 = vmatpush1.msra.mxu0 0.0
    %108 = vmatprep.mubr.f32.mxu0 0.0
    %109 = vmatmul.mubr.f32.gmra.mrb[0].mxu0 %v29
    %v110 = vpop.f32.mrb[0].mxu0
    %v111 = vadd.f32 %v25, %v110
    %v112 = vpop.f32.mrb[0].mxu0
    %113 = vmatprep.mubr.f32.mxu0 0.0
    %114 = vmatmul.mubr.f32.gmra.mrb[0].mxu0 %v32
    %v115 = vpop.f32.mrb[0].mxu0
    %v116 = vadd.f32 %v25, %v115
    %v117 = vpop.f32.mrb[0].mxu0
    %118 = vmatprep.mubr.f32.mxu0 0.0
    %119 = vmatmul.mubr.f32.gmra.mrb[0].mxu0 %v35
    %v120 = vpop.f32.mrb[0].mxu0
    %v121 = vadd.f32 %v25, %v120
    %v122 = vpop.f32.mrb[0].mxu0
    %123 = vmatprep.mubr.f32.mxu0 0.0
    %124 = vmatmul.mubr.f32.gmra.mrb[0].mxu0 %v38
    %v125 = vpop.f32.mrb[0].mxu0
    %v126 = vadd.f32 %v25, %v125
    %v127 = vpop.f32.mrb[0].mxu0
    %128 = vdwg.mxu0
    %v129 = vadd.f32 %v111, %v116
    %v130 = vadd.f32 %v129, %v121
    %v131 = vadd.f32 %v130, %v126
    %v132 = vrot.slane %v131, 4
    %v133 = vadd.f32 %v131, %v132
    %v134 = vrot.slane %v133, 2
    %v135 = vadd.f32 %v133, %v134
    %v136 = vrot.slane %v135, 1
    %v137 = vadd.f32 %v135, %v136
    %v138 = vmul.f32 %v111, %v111
    %v139 = vmul.f32 %v116, %v116
    %v140 = vmul.f32 %v121, %v121
    %v141 = vmul.f32 %v126, %v126
    %v142 = vadd.f32 %v138, %v139
    %v143 = vadd.f32 %v142, %v140
    %v144 = vadd.f32 %v143, %v141
    %v145 = vrot.slane %v144, 4
    %v146 = vadd.f32 %v144, %v145
    %v147 = vrot.slane %v146, 2
    %v148 = vadd.f32 %v146, %v147
    %v149 = vrot.slane %v148, 1
    %v150 = vadd.f32 %v148, %v149
    %v151 = vlaneseq
    %v152 = vshrl.u32 %v151, 7
    %vm153 = vcmp.eq.s32.totalorder %v152, 0
    %vm154 = vcmp.eq.s32.totalorder %v152, 1
    %v155 = vsel %vm154, %v150, 0.0
    %v156 = vsel %vm153, %v137, %v155
    %157 = vst [vmem:[#allocation2] sm:$0xff] %v156
    // Predicated region
    $region14: #{tpu_custom_call.1} parent=1 // pred_check
      _
    $region15: #{tpu_custom_call.1} parent=1 // pred_check_branch
      %159 = sbr.rel (0) target = $region17
    $region16: #{tpu_custom_call.1} parent=1 // pred_region
      %s161 = ssub.s32 128, 128
      %162 = vsyncadd [#allocation3], %s161
      %s164 = sshll.u32 [#allocation2], 4
      %s165 = int_to_ptr.vmem [resolvable:$true] %s164
      %167 = dma.vmem_to_hbm [thread:$0]  %s165, 128, %s3, [#allocation3]
    $region17: #{tpu_custom_call.1} parent=1 // pred_fallthru
      _
    // Predicated region
    $region18: #{tpu_custom_call.1} parent=1 // pred_check
      _
    $region19: #{tpu_custom_call.1} parent=1 // pred_check_branch
      %169 = sbr.rel (0) target = $region21
    $region20: #{tpu_custom_call.1} parent=1 // pred_region
      %170 = dma.done [#allocation3], 128
    $region21: #{tpu_custom_call.1} parent=1 // pred_fallthru
      _
    %171 = vsyncpa [#allocation3], 1

</llo_original>
